<compile_context>
chip_gen: v7x
topology: tpu7x:2x2x1
jax: 0.10.0
libtpu: 0.0.40
codegen_flags: <defaults>
</compile_context>

<pallas_src>
import jax
import jax.numpy as jnp
from jax.experimental import pallas as pl
from jax.experimental.pallas import tpu as pltpu


def _adaptive_sigmoid_kernel(lam_ref, x_ref, o_ref):
    # lam_ref: (1, 1) scalar in SMEM; x_ref / o_ref: (tile_rows, lanes) in VMEM.
    half_lam = 0.5 * lam_ref[0, 0]
    x = x_ref[...].astype(jnp.float32)
    # lambda * sigmoid(x) == half_lam * (1 + tanh(0.5 * x)); single EUP
    # transcendental, divide removed from the VALU path, lambda folded in.
    o_ref[...] = (half_lam + half_lam * jnp.tanh(0.5 * x)).astype(o_ref.dtype)


# ~2 MiB of f32 per input block: negligible per-step overhead; with
# double-buffered input + output (~8 MiB total) stays well under scoped VMEM.
_TARGET_BLOCK_ELEMS = 512 * 1024
_LANE_CANDIDATES = (8192, 4096, 2048, 1024, 512, 256, 128)


def _pick_lanes(n):
    """Widest lane width (multiple of 128) dividing n; else fall back to 128 + pad."""
    for lanes in _LANE_CANDIDATES:
        if n % lanes == 0:
            return lanes, 0
    padded = pl.cdiv(n, 128) * 128
    return 128, padded - n


def adaptive_sigmoid(x, lambda_param):
    """Elementwise y = lambda_param * sigmoid(x), matching the PyTorch module."""
    orig_shape = x.shape
    orig_dtype = x.dtype
    n = x.size

    lanes, pad = _pick_lanes(n)
    x_flat = jnp.ravel(x)
    if pad:
        # Rare fallback (n not a multiple of 128). Zero padding is benign:
        # the padded tail is sliced away below.
        x_flat = jnp.pad(x_flat, (0, pad))
    rows = (n + pad) // lanes
    x2d = x_flat.reshape(rows, lanes)

    # Row tile: aim for ~2 MiB blocks; must be a multiple of 8 unless it covers
    # the full row extent (either satisfies the (8, 128) block constraint).
    tile_rows = max(_TARGET_BLOCK_ELEMS // lanes, 8)
    if tile_rows >= rows:
        tile_rows = rows
    else:
        tile_rows = (tile_rows // 8) * 8

    grid = (pl.cdiv(rows, tile_rows),)
    lam = jnp.asarray(lambda_param, dtype=jnp.float32).reshape(1, 1)

    out2d = pl.pallas_call(
        _adaptive_sigmoid_kernel,
        out_shape=jax.ShapeDtypeStruct((rows, lanes), orig_dtype),
        grid_spec=pltpu.PrefetchScalarGridSpec(
            num_scalar_prefetch=0,
            grid=grid,
            in_specs=[
                # lambda scalar lives in SMEM (scalar path only).
                pl.BlockSpec(memory_space=pltpu.MemorySpace.SMEM),
                # input tile, lane-dense.
                pl.BlockSpec((tile_rows, lanes), lambda i: (i, 0)),
            ],
            out_specs=pl.BlockSpec((tile_rows, lanes), lambda i: (i, 0)),
        ),
        compiler_params=pltpu.CompilerParams(
            dimension_semantics=("parallel",),
        ),
    )(lam, x2d)

    if pad:
        return out2d.reshape(-1)[:n].reshape(orig_shape)
    return out2d.reshape(orig_shape)


if __name__ == "__main__":
    key = jax.random.PRNGKey(0)
    lambda_init = 1.0  # matches lambda_init=1.0 in the PyTorch __init__

    # NCHW input as the module would receive from a conv stack.
    x = jax.random.normal(key, (2, 4, 16, 16), dtype=jnp.float32)
    y = jax.block_until_ready(adaptive_sigmoid(x, lambda_init))
    y_ref = lambda_init * jax.nn.sigmoid(x)
    assert y.shape == x.shape and y.dtype == x.dtype
    assert jnp.allclose(y, y_ref, atol=1e-6, rtol=1e-5)

    # Odd-sized input exercises the (rare) pad-to-128 fallback path.
    x_odd = jax.random.normal(jax.random.PRNGKey(1), (3, 5, 7), dtype=jnp.float32)
    y_odd = jax.block_until_ready(adaptive_sigmoid(x_odd, 0.75))
    y_odd_ref = 0.75 * jax.nn.sigmoid(x_odd)
    assert y_odd.shape == x_odd.shape and y_odd.dtype == x_odd.dtype
    assert jnp.allclose(y_odd, y_odd_ref, atol=1e-6, rtol=1e-5)

    print("KERNEL_OK")
</pallas_src>

<mosaic_0001>
module attributes {stable_mosaic.version = 11 : i64} {
  func.func @_adaptive_sigmoid_kernel(%arg0: i32, %arg1: memref<1x1xf32, #tpu.memory_space<smem>>, %arg2: memref<1x2048xf32, #tpu.memory_space<vmem>>, %arg3: memref<1x2048xf32, #tpu.memory_space<vmem>>) attributes {dimension_semantics = [#tpu.dimension_semantics<parallel>], iteration_bounds = array<i64: 1>, scalar_prefetch = 0 : i64, scratch_operands = 0 : i64, tpu.core_type = #tpu.core_type<tc>, window_params = [{transform_indices = @transform_0, window_bounds = array<i64: 1, 1>}, {transform_indices = @transform_1, window_bounds = array<i64: 1, 2048>}, {transform_indices = @transform_2, window_bounds = array<i64: 1, 2048>}]} {
    %c0 = arith.constant 0 : index
    %c0_0 = arith.constant 0 : index
    %0 = memref.load %arg1[%c0, %c0_0] : memref<1x1xf32, #tpu.memory_space<smem>>
    %cst = arith.constant 5.000000e-01 : f32
    %1 = arith.mulf %cst, %0 : f32
    %c0_1 = arith.constant 0 : index
    %c0_2 = arith.constant 0 : index
    %2 = vector.load %arg2[%c0_1, %c0_2] : memref<1x2048xf32, #tpu.memory_space<vmem>>, vector<1x2048xf32>
    %cst_3 = arith.constant 5.000000e-01 : f32
    %3 = vector.broadcast %cst_3 : f32 to vector<1x2048xf32>
    %4 = arith.mulf %3, %2 : vector<1x2048xf32>
    %5 = math.tanh %4 : vector<1x2048xf32>
    %6 = vector.broadcast %1 : f32 to vector<1x2048xf32>
    %7 = arith.mulf %6, %5 : vector<1x2048xf32>
    %8 = vector.broadcast %1 : f32 to vector<1x2048xf32>
    %9 = arith.addf %8, %7 : vector<1x2048xf32>
    %c0_4 = arith.constant 0 : index
    %c0_5 = arith.constant 0 : index
    %10 = vector.load %arg3[%c0_4, %c0_5] : memref<1x2048xf32, #tpu.memory_space<vmem>>, vector<1x2048xf32>
    tpu.vector_store %arg3[%c0_4, %c0_5], %9 {strides = array<i32>} : memref<1x2048xf32, #tpu.memory_space<vmem>>, vector<1x2048xf32>,
    return
  }
  func.func @transform_0(%arg0: i32) -> (i32, i32) {
    %c0_i32 = arith.constant 0 : i32
    %c0_i32_0 = arith.constant 0 : i32
    %c0_i32_1 = arith.constant 0 : i32
    return %c0_i32, %c0_i32_0 : i32, i32
  }
  func.func @transform_1(%arg0: i32) -> (i32, i32) {
    %c0_i32 = arith.constant 0 : i32
    %c0_i32_0 = arith.constant 0 : i32
    return %arg0, %c0_i32 : i32, i32
  }
  func.func @transform_2(%arg0: i32) -> (i32, i32) {
    %c0_i32 = arith.constant 0 : i32
    %c0_i32_0 = arith.constant 0 : i32
    return %arg0, %c0_i32 : i32, i32
  }
}

</mosaic_0001>

<llo_original>
// kernel: tpu_custom_call.1
$region0: #{tpu_custom_call.1}
  #allocation0 [shape = 'u32[]', space=smem, size = 0x4, offset = 0x4, fixed_abs, tag = 'smem constant byte address 0x4 - core index']
  #allocation1 [shape = 'u32[144,128]{1,0:T(1,128)}', space=vmem, size = 0x12000, scoped, tag = 'internal scratch']
  #allocation2 [shape = 'f32[1,1]{1,0:T(1,128)S(6)}', space=smem, size = 0x200, scoped, tag = 'scoped memory for tpu_custom_call.1']
  %s0 = inlined_call_operand.<no memory space> [shape: f32[1,1], index: 0, kind: input, shape index: {}]
  %s1 = inlined_call_operand.hbm [shape: f32[1,2048], index: 1, kind: input, shape index: {}]
  %s2 = inlined_call_operand.hbm [shape: f32[1,2048], index: 2, kind: output, shape index: {}]
  %s3 = sld [smem:[#allocation0]]
  $region22: #{tpu_custom_call.1} parent=0
    _
  %s5 = ssub.s32 1, %s3
  %s6 = scalar_select 0, %s5, %s3
  %7 = sst [smem:[#allocation2]] %s0
  $region1: #{tpu_custom_call.1} parent=0
    #allocation3 [shape = 'u8[8192]{0}', space=vmem, size = 0x2000, scoped, tag = 'input window, operand 1, single buffered']
    #allocation4 [shape = 's32[1]{0}', space=sflag, size = 0x4, scoped, tag = 'scoped memory for tpu_custom_call.1']
    #allocation5 [shape = 's32[1]{0}', space=sflag, size = 0x4, scoped, tag = 'scoped memory for tpu_custom_call.1']
    #allocation6 [shape = 'u8[8192]{0}', space=vmem, size = 0x2000, scoped, tag = 'output window, operand 0, single buffered']
    %8 = vsyncpa [#allocation4], 0
    %9 = vsyncpa [#allocation5], 0
    // Predicated region
    $region2: #{tpu_custom_call.1} parent=1 // pred_check
      _
    $region3: #{tpu_custom_call.1} parent=1 // pred_check_branch
      %11 = sbr.rel (0) target = $region5
    $region4: #{tpu_custom_call.1} parent=1 // pred_region
      _
    $region5: #{tpu_custom_call.1} parent=1 // pred_fallthru
      _
    // Predicated region
    $region6: #{tpu_custom_call.1} parent=1 // pred_check
      _
    $region7: #{tpu_custom_call.1} parent=1 // pred_check_branch
      %13 = sbr.rel (0) target = $region9
    $region8: #{tpu_custom_call.1} parent=1 // pred_region
      %s15 = ssub.s32 256, 256
      %16 = vsyncadd [#allocation4], %s15
      %s18 = sshll.u32 [#allocation3], 4
      %s19 = int_to_ptr.vmem [resolvable:$true] %s18
      %21 = dma.hbm_to_vmem [thread:$0]  %s1, 256, %s19, [#allocation4]
    $region9: #{tpu_custom_call.1} parent=1 // pred_fallthru
      _
    // Predicated region
    $region10: #{tpu_custom_call.1} parent=1 // pred_check
      _
    $region11: #{tpu_custom_call.1} parent=1 // pred_check_branch
      %23 = sbr.rel (0) target = $region13
    $region12: #{tpu_custom_call.1} parent=1 // pred_region
      %24 = dma.done [#allocation4], 256
    $region13: #{tpu_custom_call.1} parent=1 // pred_fallthru
      _
    %s25 = sld [smem:[#allocation2]]
    %s26 = smul.f32 %s25, 0.5
    %v27 = vld [vmem:[#allocation3] sm:$0xff]
    %v28 = vld [vmem:[#allocation3 + $0x8] sm:$0xff]
    %v29 = vmul.f32 %v27, 0.5
    %v30 = vmul.f32 %v28, 0.5
    %v31 = vtanh.pop %v29
    %v32 = vtanh.pop %v30
    %v33 = vstv %s26
    %v34 = vmul.f32 %v33, %v31
    %v35 = vmul.f32 %v33, %v32
    %v36 = vadd.f32 %v33, %v34
    %v37 = vadd.f32 %v33, %v35
    %38 = vst [vmem:[#allocation6] sm:$0xff] %v36
    %39 = vst [vmem:[#allocation6 + $0x8] sm:$0xff] %v37
    // Predicated region
    $region14: #{tpu_custom_call.1} parent=1 // pred_check
      _
    $region15: #{tpu_custom_call.1} parent=1 // pred_check_branch
      %41 = sbr.rel (0) target = $region17
    $region16: #{tpu_custom_call.1} parent=1 // pred_region
      %s43 = ssub.s32 256, 256
      %44 = vsyncadd [#allocation5], %s43
      %s46 = sshll.u32 [#allocation6], 4
      %s47 = int_to_ptr.vmem [resolvable:$true] %s46
      %49 = dma.vmem_to_hbm [thread:$0]  %s47, 256, %s2, [#allocation5]
    $region17: #{tpu_custom_call.1} parent=1 // pred_fallthru
      _
    // Predicated region
    $region18: #{tpu_custom_call.1} parent=1 // pred_check
      _
    $region19: #{tpu_custom_call.1} parent=1 // pred_check_branch
      %51 = sbr.rel (0) target = $region21
    $region20: #{tpu_custom_call.1} parent=1 // pred_region
      %52 = dma.done [#allocation5], 256
    $region21: #{tpu_custom_call.1} parent=1 // pred_fallthru
      _
    %53 = vsyncpa [#allocation4], 1
    %54 = vsyncpa [#allocation5], 1

</llo_original>
